<compile_context>
chip_gen: v5e
topology: v5e:2x2
jax: 0.10.0
libtpu: 0.0.40
codegen_flags: <defaults>
</compile_context>

<pallas_src>
import functools

import jax
import jax.numpy as jnp
from jax.experimental import pallas as pl
from jax.experimental.pallas import tpu as pltpu


def _vowel_kernel(x_ref, w1_ref, b1_ref, w2_ref, b2_ref, w3_ref, b3_ref, o_ref):
    # Biases (small, VMEM-resident) read once per grid step, kept in f32.
    b1 = b1_ref[...].astype(jnp.float32)
    b2 = b2_ref[...].astype(jnp.float32)
    b3 = b3_ref[...].astype(jnp.float32)

    x = x_ref[...]  # (TB, F) in the storage dtype (f32 or bf16)

    # lin1 + tanh (MXU with f32 accumulate; nonlinearity in f32)
    h = jnp.dot(x, w1_ref[...], preferred_element_type=jnp.float32) + b1
    h = jnp.tanh(h)

    # lin2 + sigmoid
    h = jnp.dot(h.astype(w2_ref.dtype), w2_ref[...],
                preferred_element_type=jnp.float32) + b2
    h = jax.nn.sigmoid(h)

    # lin3
    logits = jnp.dot(h.astype(w3_ref.dtype), w3_ref[...],
                     preferred_element_type=jnp.float32) + b3

    # log_softmax along dim=1 (last / lane axis), numerically stable.
    m = jnp.max(logits, axis=-1, keepdims=True)
    z = logits - m
    lse = jnp.log(jnp.sum(jnp.exp(z), axis=-1, keepdims=True))
    o_ref[...] = (z - lse).astype(o_ref.dtype)


@functools.partial(jax.jit, static_argnames=("block_b", "use_bf16"))
def vowel_forward(x, w1, b1, w2, b2, w3, b3, *, block_b=4096, use_bf16=False):
    B, F = x.shape
    H = w1.shape[1]
    O = w3.shape[1]

    if use_bf16:
        # Halve the dominant x HBM stream (v6e/v7x); f32 accumulate on MXU.
        x = x.astype(jnp.bfloat16)
        w1 = w1.astype(jnp.bfloat16)
        w2 = w2.astype(jnp.bfloat16)
        w3 = w3.astype(jnp.bfloat16)

    # Batch tile: full batch if small, else a multiple-of-8 tile (satisfies
    # the (8,128) sublane constraint; last dims use full array extents).
    TB = B if B <= block_b else block_b
    grid = (pl.cdiv(B, TB),)

    def resident(a):
        # Weights/biases: same block every step -> stay VMEM-resident.
        return pl.BlockSpec(a.shape, lambda i: (0,) * a.ndim)

    flops = 2 * B * (F * H + H * H + H * O)
    transcendentals = B * (2 * H + O + 1)       # tanh + sigmoid + exp + log
    bytes_accessed = (
        x.size * x.dtype.itemsize + B * O * 4
        + sum(a.size * a.dtype.itemsize for a in (w1, b1, w2, b2, w3, b3))
    )

    return pl.pallas_call(
        _vowel_kernel,
        out_shape=jax.ShapeDtypeStruct((B, O), jnp.float32),
        grid=grid,
        in_specs=[
            pl.BlockSpec((TB, F), lambda i: (i, 0)),   # x: streamed over batch
            resident(w1), resident(b1),
            resident(w2), resident(b2),
            resident(w3), resident(b3),
        ],
        out_specs=pl.BlockSpec((TB, O), lambda i: (i, 0)),
        compiler_params=pltpu.CompilerParams(dimension_semantics=("parallel",)),
        cost_estimate=pl.CostEstimate(
            flops=flops,
            transcendentals=transcendentals,
            bytes_accessed=bytes_accessed,
        ),
    )(x, w1, b1, w2, b2, w3, b3)


def init_params(key, featuresize, hiddensize, outputsize):
    """Deterministic init mimicking torch.nn.Linear (U(-1/sqrt(fan_in), +))."""
    ks = jax.random.split(key, 6)

    def lin(kw, kb, fan_in, fan_out):
        bound = 1.0 / jnp.sqrt(fan_in)
        # Stored as [in, out] so the kernel computes x @ W.
        w = jax.random.uniform(kw, (fan_in, fan_out), jnp.float32, -bound, bound)
        b = jax.random.uniform(kb, (1, fan_out), jnp.float32, -bound, bound)
        return w, b

    w1, b1 = lin(ks[0], ks[1], featuresize, hiddensize)
    w2, b2 = lin(ks[2], ks[3], hiddensize, hiddensize)
    w3, b3 = lin(ks[4], ks[5], hiddensize, outputsize)
    return w1, b1, w2, b2, w3, b3


def reference_forward(x, w1, b1, w2, b2, w3, b3):
    h = jnp.tanh(x @ w1 + b1)
    h = jax.nn.sigmoid(h @ w2 + b2)
    logits = h @ w3 + b3
    return jax.nn.log_softmax(logits, axis=1)


if __name__ == "__main__":
    featuresize, hiddensize, outputsize = 16, 32, 8

    key = jax.random.PRNGKey(0)
    kx, kp, kx2 = jax.random.split(key, 3)
    params = init_params(kp, featuresize, hiddensize, outputsize)

    # 1) Small-batch check (single block), f32 exactness.
    batch = 8
    x = jax.random.normal(kx, (batch, featuresize), jnp.float32)
    out = jax.block_until_ready(vowel_forward(x, *params))
    ref = reference_forward(x, *params)
    assert out.shape == (batch, outputsize)
    assert jnp.allclose(out, ref, atol=1e-5, rtol=1e-5)

    # 2) Gridded check (multiple batch tiles, pipelined DMAs), f32.
    big_batch = 1024
    xb = jax.random.normal(kx2, (big_batch, featuresize), jnp.float32)
    out_b = jax.block_until_ready(vowel_forward(xb, *params, block_b=256))
    ref_b = reference_forward(xb, *params)
    assert out_b.shape == (big_batch, outputsize)
    assert jnp.allclose(out_b, ref_b, atol=1e-5, rtol=1e-5)

    # 3) bf16-input path (v6e/v7x optimization), loose tolerance.
    out_bf16 = jax.block_until_ready(
        vowel_forward(xb, *params, block_b=256, use_bf16=True))
    assert jnp.allclose(out_bf16, ref_b, atol=5e-2, rtol=5e-2)

    print("KERNEL_OK")
</pallas_src>

<mosaic_0001>
module attributes {stable_mosaic.version = 11 : i64} {
  func.func @_vowel_kernel(%arg0: i32, %arg1: memref<8x16xf32, #tpu.memory_space<vmem>>, %arg2: memref<16x32xf32, #tpu.memory_space<vmem>>, %arg3: memref<1x32xf32, #tpu.memory_space<vmem>>, %arg4: memref<32x32xf32, #tpu.memory_space<vmem>>, %arg5: memref<1x32xf32, #tpu.memory_space<vmem>>, %arg6: memref<32x8xf32, #tpu.memory_space<vmem>>, %arg7: memref<1x8xf32, #tpu.memory_space<vmem>>, %arg8: memref<8x8xf32, #tpu.memory_space<vmem>>) attributes {dimension_semantics = [#tpu.dimension_semantics<parallel>], iteration_bounds = array<i64: 1>, scalar_prefetch = 0 : i64, scratch_operands = 0 : i64, tpu.core_type = #tpu.core_type<tc>, window_params = [{transform_indices = @transform_0, window_bounds = array<i64: 8, 16>}, {pipeline_mode = #tpu.pipeline_mode<synchronous>, transform_indices = @transform_1, window_bounds = array<i64: 16, 32>}, {pipeline_mode = #tpu.pipeline_mode<synchronous>, transform_indices = @transform_2, window_bounds = array<i64: 1, 32>}, {pipeline_mode = #tpu.pipeline_mode<synchronous>, transform_indices = @transform_3, window_bounds = array<i64: 32, 32>}, {pipeline_mode = #tpu.pipeline_mode<synchronous>, transform_indices = @transform_4, window_bounds = array<i64: 1, 32>}, {pipeline_mode = #tpu.pipeline_mode<synchronous>, transform_indices = @transform_5, window_bounds = array<i64: 32, 8>}, {pipeline_mode = #tpu.pipeline_mode<synchronous>, transform_indices = @transform_6, window_bounds = array<i64: 1, 8>}, {transform_indices = @transform_7, window_bounds = array<i64: 8, 8>}]} {
    %c0 = arith.constant 0 : index
    %c0_0 = arith.constant 0 : index
    %0 = vector.load %arg3[%c0, %c0_0] : memref<1x32xf32, #tpu.memory_space<vmem>>, vector<1x32xf32>
    %c0_1 = arith.constant 0 : index
    %c0_2 = arith.constant 0 : index
    %1 = vector.load %arg5[%c0_1, %c0_2] : memref<1x32xf32, #tpu.memory_space<vmem>>, vector<1x32xf32>
    %c0_3 = arith.constant 0 : index
    %c0_4 = arith.constant 0 : index
    %2 = vector.load %arg7[%c0_3, %c0_4] : memref<1x8xf32, #tpu.memory_space<vmem>>, vector<1x8xf32>
    %c0_5 = arith.constant 0 : index
    %c0_6 = arith.constant 0 : index
    %3 = vector.load %arg1[%c0_5, %c0_6] : memref<8x16xf32, #tpu.memory_space<vmem>>, vector<8x16xf32>
    %c0_7 = arith.constant 0 : index
    %c0_8 = arith.constant 0 : index
    %4 = vector.load %arg2[%c0_7, %c0_8] : memref<16x32xf32, #tpu.memory_space<vmem>>, vector<16x32xf32>
    %cst = arith.constant dense<0.000000e+00> : vector<8x32xf32>
    %5 = tpu.matmul %3, %4, %cst {dimension_numbers = #tpu.dot_dimension_numbers<[1], [0], [0], [1], [0, 0, 1, 1], [], []>} : vector<8x16xf32>, vector<16x32xf32>, vector<8x32xf32> -> vector<8x32xf32>
    %6 = vector.broadcast %0 : vector<1x32xf32> to vector<8x32xf32>
    %7 = arith.addf %5, %6 : vector<8x32xf32>
    %8 = math.tanh %7 : vector<8x32xf32>
    %c0_9 = arith.constant 0 : index
    %c0_10 = arith.constant 0 : index
    %9 = vector.load %arg4[%c0_9, %c0_10] : memref<32x32xf32, #tpu.memory_space<vmem>>, vector<32x32xf32>
    %cst_11 = arith.constant dense<0.000000e+00> : vector<8x32xf32>
    %10 = tpu.matmul %8, %9, %cst_11 {dimension_numbers = #tpu.dot_dimension_numbers<[1], [0], [0], [1], [0, 0, 1, 1], [], []>} : vector<8x32xf32>, vector<32x32xf32>, vector<8x32xf32> -> vector<8x32xf32>
    %11 = vector.broadcast %1 : vector<1x32xf32> to vector<8x32xf32>
    %12 = arith.addf %10, %11 : vector<8x32xf32>
    %13 = arith.negf %12 : vector<8x32xf32>
    %14 = math.exp %13 : vector<8x32xf32>
    %cst_12 = arith.constant 1.000000e+00 : f32
    %15 = vector.broadcast %cst_12 : f32 to vector<8x32xf32>
    %16 = arith.addf %15, %14 : vector<8x32xf32>
    %17 = arith.divf %15, %16 : vector<8x32xf32>
    %c0_13 = arith.constant 0 : index
    %c0_14 = arith.constant 0 : index
    %18 = vector.load %arg6[%c0_13, %c0_14] : memref<32x8xf32, #tpu.memory_space<vmem>>, vector<32x8xf32>
    %cst_15 = arith.constant dense<0.000000e+00> : vector<8x8xf32>
    %19 = tpu.matmul %17, %18, %cst_15 {dimension_numbers = #tpu.dot_dimension_numbers<[1], [0], [0], [1], [0, 0, 1, 1], [], []>} : vector<8x32xf32>, vector<32x8xf32>, vector<8x8xf32> -> vector<8x8xf32>
    %20 = vector.broadcast %2 : vector<1x8xf32> to vector<8x8xf32>
    %21 = arith.addf %19, %20 : vector<8x8xf32>
    %cst_16 = arith.constant dense<0xFF800000> : vector<8xf32>
    %22 = vector.multi_reduction <maximumf>, %21, %cst_16 [1] : vector<8x8xf32> to vector<8xf32>
    %23 = vector.shape_cast %22 : vector<8xf32> to vector<8x1xf32>
    %24 = vector.broadcast %23 : vector<8x1xf32> to vector<8x8xf32>
    %25 = arith.subf %21, %24 : vector<8x8xf32>
    %26 = math.exp %25 : vector<8x8xf32>
    %cst_17 = arith.constant dense<0.000000e+00> : vector<8xf32>
    %27 = vector.multi_reduction <add>, %26, %cst_17 [1] : vector<8x8xf32> to vector<8xf32>
    %28 = vector.shape_cast %27 : vector<8xf32> to vector<8x1xf32>
    %29 = math.log %28 : vector<8x1xf32>
    %30 = vector.broadcast %29 : vector<8x1xf32> to vector<8x8xf32>
    %31 = arith.subf %25, %30 : vector<8x8xf32>
    %c0_18 = arith.constant 0 : index
    %c0_19 = arith.constant 0 : index
    %32 = vector.load %arg8[%c0_18, %c0_19] : memref<8x8xf32, #tpu.memory_space<vmem>>, vector<8x8xf32>
    tpu.vector_store %arg8[%c0_18, %c0_19], %31 {strides = array<i32>} : memref<8x8xf32, #tpu.memory_space<vmem>>, vector<8x8xf32>,
    return
  }
  func.func @transform_0(%arg0: i32) -> (i32, i32) {
    %c0_i32 = arith.constant 0 : i32
    %c0_i32_0 = arith.constant 0 : i32
    return %arg0, %c0_i32 : i32, i32
  }
  func.func @transform_1(%arg0: i32) -> (i32, i32) {
    %c0_i32 = arith.constant 0 : i32
    %c0_i32_0 = arith.constant 0 : i32
    %c0_i32_1 = arith.constant 0 : i32
    return %c0_i32, %c0_i32_0 : i32, i32
  }
  func.func @transform_2(%arg0: i32) -> (i32, i32) {
    %c0_i32 = arith.constant 0 : i32
    %c0_i32_0 = arith.constant 0 : i32
    %c0_i32_1 = arith.constant 0 : i32
    return %c0_i32, %c0_i32_0 : i32, i32
  }
  func.func @transform_3(%arg0: i32) -> (i32, i32) {
    %c0_i32 = arith.constant 0 : i32
    %c0_i32_0 = arith.constant 0 : i32
    %c0_i32_1 = arith.constant 0 : i32
    return %c0_i32, %c0_i32_0 : i32, i32
  }
  func.func @transform_4(%arg0: i32) -> (i32, i32) {
    %c0_i32 = arith.constant 0 : i32
    %c0_i32_0 = arith.constant 0 : i32
    %c0_i32_1 = arith.constant 0 : i32
    return %c0_i32, %c0_i32_0 : i32, i32
  }
  func.func @transform_5(%arg0: i32) -> (i32, i32) {
    %c0_i32 = arith.constant 0 : i32
    %c0_i32_0 = arith.constant 0 : i32
    %c0_i32_1 = arith.constant 0 : i32
    return %c0_i32, %c0_i32_0 : i32, i32
  }
  func.func @transform_6(%arg0: i32) -> (i32, i32) {
    %c0_i32 = arith.constant 0 : i32
    %c0_i32_0 = arith.constant 0 : i32
    %c0_i32_1 = arith.constant 0 : i32
    return %c0_i32, %c0_i32_0 : i32, i32
  }
  func.func @transform_7(%arg0: i32) -> (i32, i32) {
    %c0_i32 = arith.constant 0 : i32
    %c0_i32_0 = arith.constant 0 : i32
    return %arg0, %c0_i32 : i32, i32
  }
}

</mosaic_0001>

<llo_original>
// kernel: vowel_forward.1
$region0: #{vowel_forward.1}
  #allocation0 [shape = 'u32[]', space=smem, size = 0x4, offset = 0x4, fixed_abs, tag = 'smem constant byte address 0x4 - core index']
  #allocation1 [shape = 'u32[72,128]{1,0:T(1,128)}', space=vmem, size = 0x9000, scoped, tag = 'internal scratch']
  %s0 = inlined_call_operand.vmem [shape: f32[8,16], index: 0, kind: input, shape index: {}]
  %s1 = inlined_call_operand.hbm [shape: f32[16,32], index: 1, kind: input, shape index: {}]
  %s2 = inlined_call_operand.vmem [shape: f32[1,32], index: 2, kind: input, shape index: {}]
  %s3 = inlined_call_operand.vmem [shape: f32[32,32], index: 3, kind: input, shape index: {}]
  %s4 = inlined_call_operand.vmem [shape: f32[1,32], index: 4, kind: input, shape index: {}]
  %s5 = inlined_call_operand.vmem [shape: f32[32,8], index: 5, kind: input, shape index: {}]
  %s6 = inlined_call_operand.vmem [shape: f32[1,8], index: 6, kind: input, shape index: {}]
  %s7 = inlined_call_operand.hbm [shape: f32[8,8], index: 7, kind: output, shape index: {}]
  %s8 = sld [smem:[#allocation0]]
  $region42: #{vowel_forward.1} parent=0
    _
  %s10 = ssub.s32 1, %s8
  %s11 = scalar_select 0, %s10, %s8
  $region1: #{vowel_forward.1} parent=0
    #allocation2 [shape = 'u8[8192]{0}', space=vmem, size = 0x2000, scoped, tag = 'input window, operand 1, single buffered']
    #allocation3 [shape = 's32[1]{0}', space=sflag, size = 0x4, scoped, tag = 'scoped memory for vowel_forward.1']
    #allocation4 [shape = 's32[1]{0}', space=sflag, size = 0x4, scoped, tag = 'scoped memory for vowel_forward.1']
    #allocation5 [shape = 'u8[4096]{0}', space=vmem, size = 0x1000, scoped, tag = 'output window, operand 0, single buffered']
    %12 = vsyncpa [#allocation3], 0
    %13 = vsyncpa [#allocation4], 0
    // Predicated region
    $region2: #{vowel_forward.1} parent=1 // pred_check
      _
    $region3: #{vowel_forward.1} parent=1 // pred_check_branch
      %15 = sbr.rel (0) target = $region5
    $region4: #{vowel_forward.1} parent=1 // pred_region
      _
    $region5: #{vowel_forward.1} parent=1 // pred_fallthru
      _
    // Predicated region
    $region6: #{vowel_forward.1} parent=1 // pred_check
      _
    $region7: #{vowel_forward.1} parent=1 // pred_check_branch
      %17 = sbr.rel (0) target = $region9
    $region8: #{vowel_forward.1} parent=1 // pred_region
      %19 = vsyncadd [#allocation3], 0
      %s20 = sshll.u32 %s1, 4
      %s21 = int_to_ptr.hbm [resolvable:$true] %s20
      %s22 = sshll.u32 [#allocation2], 4
      %s23 = int_to_ptr.vmem [resolvable:$true] %s22
      %28 = dma.hbm_to_vmem [thread:$0]  %s21, 256, %s23, [#allocation3], 128, 128, 8
    $region9: #{vowel_forward.1} parent=1 // pred_fallthru
      _
    // Predicated region
    $region10: #{vowel_forward.1} parent=1 // pred_check
      _
    $region11: #{vowel_forward.1} parent=1 // pred_check_branch
      %30 = sbr.rel (0) target = $region13
    $region12: #{vowel_forward.1} parent=1 // pred_region
      _
    $region13: #{vowel_forward.1} parent=1 // pred_fallthru
      _
    // Predicated region
    $region14: #{vowel_forward.1} parent=1 // pred_check
      _
    $region15: #{vowel_forward.1} parent=1 // pred_check_branch
      %32 = sbr.rel (0) target = $region17
    $region16: #{vowel_forward.1} parent=1 // pred_region
      _
    $region17: #{vowel_forward.1} parent=1 // pred_fallthru
      _
    // Predicated region
    $region18: #{vowel_forward.1} parent=1 // pred_check
      _
    $region19: #{vowel_forward.1} parent=1 // pred_check_branch
      %34 = sbr.rel (0) target = $region21
    $region20: #{vowel_forward.1} parent=1 // pred_region
      _
    $region21: #{vowel_forward.1} parent=1 // pred_fallthru
      _
    // Predicated region
    $region22: #{vowel_forward.1} parent=1 // pred_check
      _
    $region23: #{vowel_forward.1} parent=1 // pred_check_branch
      %36 = sbr.rel (0) target = $region25
    $region24: #{vowel_forward.1} parent=1 // pred_region
      _
    $region25: #{vowel_forward.1} parent=1 // pred_fallthru
      _
    // Predicated region
    $region26: #{vowel_forward.1} parent=1 // pred_check
      _
    $region27: #{vowel_forward.1} parent=1 // pred_check_branch
      %38 = sbr.rel (0) target = $region29
    $region28: #{vowel_forward.1} parent=1 // pred_region
      _
    $region29: #{vowel_forward.1} parent=1 // pred_fallthru
      _
    // Predicated region
    $region30: #{vowel_forward.1} parent=1 // pred_check
      _
    $region31: #{vowel_forward.1} parent=1 // pred_check_branch
      %40 = sbr.rel (0) target = $region33
    $region32: #{vowel_forward.1} parent=1 // pred_region
      %42 = dma.done [#allocation3], 256
    $region33: #{vowel_forward.1} parent=1 // pred_fallthru
      _
    %v43 = vld [vmem:[%s2] sm:$0x1]
    %v44 = vld [vmem:[%s4] sm:$0x1]
    %v45 = vld [vmem:[%s6] sm:$0x1]
    %v46 = vld [vmem:[%s0] sm:$0xff]
    %v47 = vld [vmem:[#allocation2] sm:$0xff]
    %v48 = vld [vmem:[#allocation2 + $0x8] sm:$0xff]
    %v50 = vperm.slane %v43, 0
    %vm52 = vcmask 130048
    %v54 = vsel %vm52, %v46, 0
    %56 = vmatpush.msra.mxu0 0.0
    %57 = vmatpush.msra.mxu0 0.0
    %58 = vmatpush.msra.mxu0 0.0
    %59 = vmatpush.msra.mxu0 0.0
    %60 = vmatpush.msra.mxu0 0.0
    %61 = vmatpush.msra.mxu0 0.0
    %62 = vmatpush.msra.mxu0 0.0
    %63 = vmatpush.msra.mxu0 0.0
    %64 = vmatpush.msra.mxu0 0.0
    %65 = vmatpush.msra.mxu0 0.0
    %66 = vmatpush.msra.mxu0 0.0
    %67 = vmatpush.msra.mxu0 0.0
    %68 = vmatpush.msra.mxu0 0.0
    %69 = vmatpush.msra.mxu0 0.0
    %70 = vmatpush.msra.mxu0 %v48
    %71 = vmatpush.msra.mxu0 %v47
    %72 = vmatmul.f32.gmra.mxu0 %v54
    %v73 = vpop.f32.mrf.mxu0
    %v74 = vadd.f32 %v50, %v73
    %75 = vdwg.mxu0
    %v76 = vtanh.pop %v74
    %v77 = vld [vmem:[%s3] sm:$0xff]
    %v78 = vld [vmem:[%s3 + $0x8] sm:$0xff]
    %v79 = vld [vmem:[%s3 + $0x10] sm:$0xff]
    %v80 = vld [vmem:[%s3 + $0x18] sm:$0xff]
    %v82 = vperm.slane %v44, 0
    %vm84 = vcmask 261120
    %v86 = vsel %vm84, %v76, 0
    %88 = vmatpush.msra.mxu0 0.0
    %89 = vmatpush.msra.mxu0 0.0
    %90 = vmatpush.msra.mxu0 0.0
    %91 = vmatpush.msra.mxu0 0.0
    %92 = vmatpush.msra.mxu0 0.0
    %93 = vmatpush.msra.mxu0 0.0
    %94 = vmatpush.msra.mxu0 0.0
    %95 = vmatpush.msra.mxu0 0.0
    %96 = vmatpush.msra.mxu0 0.0
    %97 = vmatpush.msra.mxu0 0.0
    %98 = vmatpush.msra.mxu0 0.0
    %99 = vmatpush.msra.mxu0 0.0
    %100 = vmatpush.msra.mxu0 %v80
    %101 = vmatpush.msra.mxu0 %v79
    %102 = vmatpush.msra.mxu0 %v78
    %103 = vmatpush.msra.mxu0 %v77
    %104 = vmatmul.f32.gmra.mxu0 %v86
    %v105 = vpop.f32.mrf.mxu0
    %v106 = vadd.f32 %v82, %v105
    %107 = vdwg.mxu0
    %v108 = vxor.u32 %v106, 2147483648
    %v109 = vmul.f32 %v108, 1.442695
    %v110 = vpow.pop %v109
    %v111 = vadd.f32 %v110, 1.0
    %v112 = vrcp.pop %v111
    %v113 = vmul.f32 %v111, %v112
    %v114 = vsub.f32 1.0, %v113
    %v115 = vmul.f32 %v112, %v114
    %v116 = vadd.f32 %v112, %v115
    %vm117 = vweird.f32 %v111
    %vm118 = vweird.f32 %v112
    %vm119 = vmor %vm117, %vm118
    %v120 = vsel %vm119, %v112, %v116
    %v121 = vand.u32 2147483647, %v111
    %vm122 = vcmp.eq.f32.partialorder %v121, 8.507059e+37
    %v123 = vand.u32 %v111, 2147483648
    %v124 = vor.u32 1.1754944e-38, %v123
    %v125 = vsel %vm122, %v124, %v120
    %v126 = vmul.f32 1.0, %v125
    %v127 = vld [vmem:[%s5] sm:$0xff]
    %v128 = vld [vmem:[%s5 + $0x8] sm:$0xff]
    %v129 = vld [vmem:[%s5 + $0x10] sm:$0xff]
    %v130 = vld [vmem:[%s5 + $0x18] sm:$0xff]
    %v132 = vperm.slane %v45, 0
    %v135 = vsel %vm84, %v126, 0
    %137 = vmatpush.msra.mxu0 0.0
    %138 = vmatpush.msra.mxu0 0.0
    %139 = vmatpush.msra.mxu0 0.0
    %140 = vmatpush.msra.mxu0 0.0
    %141 = vmatpush.msra.mxu0 0.0
    %142 = vmatpush.msra.mxu0 0.0
    %143 = vmatpush.msra.mxu0 0.0
    %144 = vmatpush.msra.mxu0 0.0
    %145 = vmatpush.msra.mxu0 0.0
    %146 = vmatpush.msra.mxu0 0.0
    %147 = vmatpush.msra.mxu0 0.0
    %148 = vmatpush.msra.mxu0 0.0
    %149 = vmatpush.msra.mxu0 %v130
    %150 = vmatpush.msra.mxu0 %v129
    %151 = vmatpush.msra.mxu0 %v128
    %152 = vmatpush.msra.mxu0 %v127
    %153 = vmatmul.f32.gmra.mxu0 %v135
    %v154 = vpop.f32.mrf.mxu0
    %v155 = vadd.f32 %v132, %v154
    %156 = vdwg.mxu0
    %vm157 = vcmask 64512
    %v158 = vsel %vm157, %v155, -inf
    %159 = vmax.xlane.f32.xlu0 %v158
    %v160 = vpop.xlane.xlu0 %159
    %v161 = vsub.f32 %v155, %v160
    %v162 = vmul.f32 %v161, 1.442695
    %v163 = vpow.pop %v162
    %v164 = vsel %vm157, %v163, 0.0
    %165 = vadd.xlane.f32.xlu0 %v164
    %v166 = vpop.xlane.xlu0 %165
    %v167 = vlog2.pop %v166
    %v168 = vmul.f32 %v167, 0.6931472
    %v169 = vsub.f32 %v161, %v168
    %170 = vst.msk [vmem:[#allocation5] sm:$0xff] %vm157, %v169
    // Predicated region
    $region34: #{vowel_forward.1} parent=1 // pred_check
      _
    $region35: #{vowel_forward.1} parent=1 // pred_check_branch
      %172 = sbr.rel (0) target = $region37
    $region36: #{vowel_forward.1} parent=1 // pred_region
      %174 = vsyncadd [#allocation4], 0
      %s176 = sshll.u32 [#allocation5], 4
      %s177 = int_to_ptr.vmem [resolvable:$true] %s176
      %s178 = sshll.u32 %s7, 4
      %s179 = int_to_ptr.hbm [resolvable:$true] %s178
      %181 = dma.vmem_to_hbm [thread:$0]  %s177, 128, %s179, [#allocation4]
    $region37: #{vowel_forward.1} parent=1 // pred_fallthru
      _
    // Predicated region
    $region38: #{vowel_forward.1} parent=1 // pred_check
      _
    $region39: #{vowel_forward.1} parent=1 // pred_check_branch
      %183 = sbr.rel (0) target = $region41
    $region40: #{vowel_forward.1} parent=1 // pred_region
      %185 = dma.done [#allocation4], 128
    $region41: #{vowel_forward.1} parent=1 // pred_fallthru
      _
    %186 = vsyncpa [#allocation3], 1
    %187 = vsyncpa [#allocation4], 1

</llo_original>
